<compile_context>
chip_gen: v7x
topology: tpu7x:2x2x1
jax: 0.10.0
libtpu: 0.0.40
codegen_flags: <defaults>
</compile_context>

<pallas_src>
import jax
import jax.numpy as jnp
from jax.experimental import pallas as pl
from jax.experimental.pallas import tpu as pltpu


def _round_up(x: int, m: int) -> int:
    return (x + m - 1) // m * m


def _choose_tk(H: int) -> int:
    """Largest of {512, 256, 128} that divides H, else the full H."""
    for tk in (512, 256, 128):
        if H % tk == 0:
            return tk
    return H


def _choose_tb(B: int, block_b: int) -> int:
    """Batch tile: multiple of 16 (bf16 packing), >=2 tiles when possible,
    padding-waste bounded, capped at block_b."""
    b16 = _round_up(B, 16)
    tb = min(block_b, _round_up(pl.cdiv(b16, 2), 16))
    return max(tb, 16)


def _head_kernel(cls_ref, wd_ref, bd_ref, wo_ref, bo_ref, out_ref, acc_ref):
    # cls_ref: [tb, tk] bf16   (CLS rows, K chunk of hidden dim)
    # wd_ref:  [tk, H]  bf16   (dense weight, K chunk)
    # acc_ref: [tb, H]  f32    (dense partial sums, resident across K)
    k = pl.program_id(1)

    @pl.when(k == 0)
    def _init():
        acc_ref[...] = jnp.zeros_like(acc_ref)

    # Dense matmul chunk: bf16 x bf16 -> f32 accumulate on the MXU.
    acc_ref[...] += jnp.dot(cls_ref[...], wd_ref[...],
                            preferred_element_type=jnp.float32)

    @pl.when(k == pl.num_programs(1) - 1)
    def _finalize():
        h = jnp.tanh(acc_ref[...] + bd_ref[...])        # f32 bias + tanh (VPU/EUP)
        h = h.astype(wo_ref.dtype)                       # bf16 for the MXU
        # out_proj: lane-dense (L padded to 128), f32 accumulate.
        logits = jnp.dot(h, wo_ref[...], preferred_element_type=jnp.float32)
        out_ref[...] = (logits + bo_ref[...]).astype(out_ref.dtype)


def prepare_head_params(dense_w, dense_b, out_w, out_b, *, param_dtype=jnp.bfloat16):
    """One-time prep: transpose to [in, out], pad labels to 128 lanes, cast to bf16.

    dense_w: [H, H] (PyTorch [out, in]), dense_b: [H]
    out_w:   [L, H] (PyTorch [out, in]), out_b:   [L]
    """
    H = dense_w.shape[1]
    L = out_w.shape[0]
    L_pad = _round_up(L, 128)  # keep exactly 128 for small L (don't pad to 256)

    wd_t = jnp.asarray(dense_w, param_dtype).T                       # [H, H]
    bd = jnp.asarray(dense_b, jnp.float32).reshape(1, H)             # [1, H]  (f32)
    wo_t = jnp.zeros((H, L_pad), param_dtype)
    wo_t = wo_t.at[:, :L].set(jnp.asarray(out_w, param_dtype).T)     # [H, L_pad]
    bo = jnp.zeros((1, L_pad), jnp.float32)
    bo = bo.at[:, :L].set(jnp.asarray(out_b, jnp.float32))           # [1, L_pad] (f32)
    return wd_t, bd, wo_t, bo


def roberta_classification_head(features, prepared_params, num_labels, *, block_b=256):
    """features: [B, S, H]; prepared_params from prepare_head_params."""
    wd_t, bd, wo_t, bo = prepared_params
    B, S, H = features.shape
    L_pad = wo_t.shape[1]

    # CLS slice + bf16 cast. allow_input_fusion on operand 0 lets XLA fuse this
    # producer into the Mosaic custom call instead of materializing a [B, H]
    # temp in HBM.
    cls = features[:, 0, :].astype(wd_t.dtype)                       # [B, H]

    tb = _choose_tb(B, block_b)
    B_pad = _round_up(B, tb)
    if B_pad != B:
        cls = jnp.pad(cls, ((0, B_pad - B), (0, 0)))

    tk = _choose_tk(H)
    grid = (B_pad // tb, H // tk)

    out = pl.pallas_call(
        _head_kernel,
        out_shape=jax.ShapeDtypeStruct((B_pad, L_pad), jnp.float32),
        grid=grid,
        in_specs=[
            pl.BlockSpec((tb, tk), lambda i, k: (i, k)),       # CLS rows, B x K tiled
            pl.BlockSpec((tk, H), lambda i, k: (k, 0)),        # dense weight, K tiled
            pl.BlockSpec((1, H), lambda i, k: (0, 0)),         # dense bias, resident
            pl.BlockSpec((H, L_pad), lambda i, k: (0, 0)),     # out_proj weight, resident
            pl.BlockSpec((1, L_pad), lambda i, k: (0, 0)),     # out_proj bias, resident
        ],
        out_specs=pl.BlockSpec((tb, L_pad), lambda i, k: (i, 0)),
        scratch_shapes=[pltpu.VMEM((tb, H), jnp.float32)],     # dense accumulator
        compiler_params=pltpu.CompilerParams(
            # batch tiles shard across TensorCores (v7x); K is a reduction.
            dimension_semantics=("parallel", "arbitrary"),
            # Fuse the CLS slice / bf16 cast into the kernel's operand 0.
            allow_input_fusion=[True, False, False, False, False],
        ),
    )(cls, wd_t, bd, wo_t, bo)

    # Un-pad: real batch rows and real label columns.
    return out[:B, :num_labels]


def _reference(features, dense_w, dense_b, out_w, out_b):
    x = features[:, 0, :]
    x = jnp.tanh(x @ dense_w.T + dense_b)
    return x @ out_w.T + out_b


if __name__ == "__main__":
    # Small config: batch=2, seq=8, hidden_size=32, num_labels=4
    B, S, H, L = 2, 8, 32, 4

    key = jax.random.PRNGKey(0)
    k_feat, k_dw, k_db, k_ow, k_ob = jax.random.split(key, 5)

    features = jax.random.normal(k_feat, (B, S, H), dtype=jnp.float32)
    dense_w = jax.random.normal(k_dw, (H, H), dtype=jnp.float32) * 0.05
    dense_b = jax.random.normal(k_db, (H,), dtype=jnp.float32) * 0.05
    out_w = jax.random.normal(k_ow, (L, H), dtype=jnp.float32) * 0.05
    out_b = jax.random.normal(k_ob, (L,), dtype=jnp.float32) * 0.05

    # One-time parameter prep (transpose / pad / bf16) outside the hot path.
    params = prepare_head_params(dense_w, dense_b, out_w, out_b)

    out = roberta_classification_head(features, params, num_labels=L)
    out = jax.block_until_ready(out)

    ref = _reference(features, dense_w, dense_b, out_w, out_b)
    assert out.shape == (B, L)
    # bf16 activations/weights in the kernel vs pure-f32 reference -> loose tol.
    assert jnp.allclose(out, ref, atol=2e-2, rtol=2e-2), "mismatch vs reference"

    print("KERNEL_OK")
</pallas_src>

<mosaic_0001>
module attributes {stable_mosaic.version = 11 : i64} {
  func.func @_head_kernel(%arg0: i32, %arg1: i32, %arg2: memref<16x32xbf16, #tpu.memory_space<vmem>>, %arg3: memref<32x32xbf16, #tpu.memory_space<vmem>>, %arg4: memref<1x32xf32, #tpu.memory_space<vmem>>, %arg5: memref<32x128xbf16, #tpu.memory_space<vmem>>, %arg6: memref<1x128xf32, #tpu.memory_space<vmem>>, %arg7: memref<16x128xf32, #tpu.memory_space<vmem>>, %arg8: memref<16x32xf32, #tpu.memory_space<vmem>>) attributes {dimension_semantics = [#tpu.dimension_semantics<parallel>, #tpu.dimension_semantics<arbitrary>], iteration_bounds = array<i64: 1, 1>, scalar_prefetch = 0 : i64, scratch_operands = 1 : i64, tpu.core_type = #tpu.core_type<tc>, window_params = [{transform_indices = @transform_0, window_bounds = array<i64: 16, 32>}, {transform_indices = @transform_1, window_bounds = array<i64: 32, 32>}, {pipeline_mode = #tpu.pipeline_mode<synchronous>, transform_indices = @transform_2, window_bounds = array<i64: 1, 32>}, {pipeline_mode = #tpu.pipeline_mode<synchronous>, transform_indices = @transform_3, window_bounds = array<i64: 32, 128>}, {pipeline_mode = #tpu.pipeline_mode<synchronous>, transform_indices = @transform_4, window_bounds = array<i64: 1, 128>}, {transform_indices = @transform_5, window_bounds = array<i64: 16, 128>}]} {
    %c0_i32 = arith.constant 0 : i32
    %0 = arith.cmpi eq, %arg1, %c0_i32 : i32
    %1 = arith.extui %0 : i1 to i32
    %c0_i32_0 = arith.constant 0 : i32
    %2 = arith.cmpi ne, %1, %c0_i32_0 : i32
    scf.if %2 {
      %cst_10 = arith.constant 0.000000e+00 : f32
      %12 = vector.broadcast %cst_10 : f32 to vector<16x32xf32>
      %c0_11 = arith.constant 0 : index
      %c0_12 = arith.constant 0 : index
      %13 = vector.load %arg8[%c0_11, %c0_12] : memref<16x32xf32, #tpu.memory_space<vmem>>, vector<16x32xf32>
      tpu.vector_store %arg8[%c0_11, %c0_12], %12 {strides = array<i32>} : memref<16x32xf32, #tpu.memory_space<vmem>>, vector<16x32xf32>,
    } else {
    }
    %c0 = arith.constant 0 : index
    %c0_1 = arith.constant 0 : index
    %3 = vector.load %arg8[%c0, %c0_1] : memref<16x32xf32, #tpu.memory_space<vmem>>, vector<16x32xf32>
    %c0_2 = arith.constant 0 : index
    %c0_3 = arith.constant 0 : index
    %4 = vector.load %arg2[%c0_2, %c0_3] : memref<16x32xbf16, #tpu.memory_space<vmem>>, vector<16x32xbf16>
    %c0_4 = arith.constant 0 : index
    %c0_5 = arith.constant 0 : index
    %5 = vector.load %arg3[%c0_4, %c0_5] : memref<32x32xbf16, #tpu.memory_space<vmem>>, vector<32x32xbf16>
    %cst = arith.constant dense<0.000000e+00> : vector<16x32xf32>
    %6 = tpu.matmul %4, %5, %cst {dimension_numbers = #tpu.dot_dimension_numbers<[1], [0], [0], [1], [0, 0, 1, 1], [], []>} : vector<16x32xbf16>, vector<32x32xbf16>, vector<16x32xf32> -> vector<16x32xf32>
    %7 = arith.addf %3, %6 : vector<16x32xf32>
    %c0_6 = arith.constant 0 : index
    %c0_7 = arith.constant 0 : index
    %8 = vector.load %arg8[%c0_6, %c0_7] : memref<16x32xf32, #tpu.memory_space<vmem>>, vector<16x32xf32>
    tpu.vector_store %arg8[%c0_6, %c0_7], %7 {strides = array<i32>} : memref<16x32xf32, #tpu.memory_space<vmem>>, vector<16x32xf32>,
    %c0_i32_8 = arith.constant 0 : i32
    %9 = arith.cmpi eq, %arg1, %c0_i32_8 : i32
    %10 = arith.extui %9 : i1 to i32
    %c0_i32_9 = arith.constant 0 : i32
    %11 = arith.cmpi ne, %10, %c0_i32_9 : i32
    scf.if %11 {
      %c0_10 = arith.constant 0 : index
      %c0_11 = arith.constant 0 : index
      %12 = vector.load %arg8[%c0_10, %c0_11] : memref<16x32xf32, #tpu.memory_space<vmem>>, vector<16x32xf32>
      %c0_12 = arith.constant 0 : index
      %c0_13 = arith.constant 0 : index
      %13 = vector.load %arg4[%c0_12, %c0_13] : memref<1x32xf32, #tpu.memory_space<vmem>>, vector<1x32xf32>
      %14 = vector.broadcast %13 : vector<1x32xf32> to vector<16x32xf32>
      %15 = arith.addf %12, %14 : vector<16x32xf32>
      %16 = math.tanh %15 : vector<16x32xf32>
      %17 = arith.truncf %16 : vector<16x32xf32> to vector<16x32xbf16>
      %c0_14 = arith.constant 0 : index
      %c0_15 = arith.constant 0 : index
      %18 = vector.load %arg5[%c0_14, %c0_15] : memref<32x128xbf16, #tpu.memory_space<vmem>>, vector<32x128xbf16>
      %cst_16 = arith.constant dense<0.000000e+00> : vector<16x128xf32>
      %19 = tpu.matmul %17, %18, %cst_16 {dimension_numbers = #tpu.dot_dimension_numbers<[1], [0], [0], [1], [0, 0, 1, 1], [], []>} : vector<16x32xbf16>, vector<32x128xbf16>, vector<16x128xf32> -> vector<16x128xf32>
      %c0_17 = arith.constant 0 : index
      %c0_18 = arith.constant 0 : index
      %20 = vector.load %arg6[%c0_17, %c0_18] : memref<1x128xf32, #tpu.memory_space<vmem>>, vector<1x128xf32>
      %21 = vector.broadcast %20 : vector<1x128xf32> to vector<16x128xf32>
      %22 = arith.addf %19, %21 : vector<16x128xf32>
      %c0_19 = arith.constant 0 : index
      %c0_20 = arith.constant 0 : index
      %23 = vector.load %arg7[%c0_19, %c0_20] : memref<16x128xf32, #tpu.memory_space<vmem>>, vector<16x128xf32>
      tpu.vector_store %arg7[%c0_19, %c0_20], %22 {strides = array<i32>} : memref<16x128xf32, #tpu.memory_space<vmem>>, vector<16x128xf32>,
    } else {
    }
    return
  }
  func.func @transform_0(%arg0: i32, %arg1: i32) -> (i32, i32) {
    %c0_i32 = arith.constant 0 : i32
    return %arg0, %arg1 : i32, i32
  }
  func.func @transform_1(%arg0: i32, %arg1: i32) -> (i32, i32) {
    %c0_i32 = arith.constant 0 : i32
    %c0_i32_0 = arith.constant 0 : i32
    return %arg1, %c0_i32 : i32, i32
  }
  func.func @transform_2(%arg0: i32, %arg1: i32) -> (i32, i32) {
    %c0_i32 = arith.constant 0 : i32
    %c0_i32_0 = arith.constant 0 : i32
    %c0_i32_1 = arith.constant 0 : i32
    return %c0_i32, %c0_i32_0 : i32, i32
  }
  func.func @transform_3(%arg0: i32, %arg1: i32) -> (i32, i32) {
    %c0_i32 = arith.constant 0 : i32
    %c0_i32_0 = arith.constant 0 : i32
    %c0_i32_1 = arith.constant 0 : i32
    return %c0_i32, %c0_i32_0 : i32, i32
  }
  func.func @transform_4(%arg0: i32, %arg1: i32) -> (i32, i32) {
    %c0_i32 = arith.constant 0 : i32
    %c0_i32_0 = arith.constant 0 : i32
    %c0_i32_1 = arith.constant 0 : i32
    return %c0_i32, %c0_i32_0 : i32, i32
  }
  func.func @transform_5(%arg0: i32, %arg1: i32) -> (i32, i32) {
    %c0_i32 = arith.constant 0 : i32
    %c0_i32_0 = arith.constant 0 : i32
    return %arg0, %c0_i32 : i32, i32
  }
}

</mosaic_0001>

<llo_original>
// kernel: tpu_custom_call.1
$region0: #{tpu_custom_call.1}
  #allocation0 [shape = 'u32[]', space=smem, size = 0x4, offset = 0x4, fixed_abs, tag = 'smem constant byte address 0x4 - core index']
  #allocation1 [shape = 'u32[144,128]{1,0:T(1,128)}', space=vmem, size = 0x12000, scoped, tag = 'internal scratch']
  #allocation2 [shape = 'f32[16,32]{1,0:T(8,128)}', space=vmem, size = 0x2000, scoped, tag = 'scratch operand']
  %s0 = inlined_call_operand.hbm [shape: bf16[16,32], index: 0, kind: input, shape index: {}]
  %s1 = inlined_call_operand.hbm [shape: bf16[32,32], index: 1, kind: input, shape index: {}]
  %s2 = inlined_call_operand.vmem [shape: f32[1,32], index: 2, kind: input, shape index: {}]
  %s3 = inlined_call_operand.hbm [shape: bf16[32,128], index: 3, kind: input, shape index: {}]
  %s4 = inlined_call_operand.vmem [shape: f32[1,128], index: 4, kind: input, shape index: {}]
  %s5 = inlined_call_operand.hbm [shape: f32[16,128], index: 5, kind: output, shape index: {}]
  %s6 = sld [smem:[#allocation0]]
  $region50: #{tpu_custom_call.1} parent=0
    _
  %s8 = ssub.s32 1, %s6
  %s9 = scalar_select 0, %s8, %s6
  $region1: #{tpu_custom_call.1} parent=0
    #allocation3 [shape = 'u8[4096]{0}', space=vmem, size = 0x1000, scoped, tag = 'input window, operand 0, single buffered']
    #allocation4 [shape = 's32[1]{0}', space=sflag, size = 0x4, scoped, tag = 'scoped memory for tpu_custom_call.1']
    #allocation5 [shape = 's32[1]{0}', space=sflag, size = 0x4, scoped, tag = 'scoped memory for tpu_custom_call.1']
    #allocation6 [shape = 'u8[8192]{0}', space=vmem, size = 0x2000, scoped, tag = 'input window, operand 1, single buffered']
    #allocation7 [shape = 's32[1]{0}', space=sflag, size = 0x4, scoped, tag = 'scoped memory for tpu_custom_call.1']
    #allocation8 [shape = 'u8[8192]{0}', space=vmem, size = 0x2000, scoped, tag = 'input window, operand 3, single buffered']
    #allocation9 [shape = 'u8[8192]{0}', space=vmem, size = 0x2000, scoped, tag = 'output window, operand 0, single buffered']
    %10 = vsyncpa [#allocation4], 0
    %11 = vsyncpa [#allocation7], 0
    %12 = vsyncpa [#allocation5], 0
    // Predicated region
    $region2: #{tpu_custom_call.1} parent=1 // pred_check
      _
    $region3: #{tpu_custom_call.1} parent=1 // pred_check_branch
      %14 = sbr.rel (0) target = $region5
    $region4: #{tpu_custom_call.1} parent=1 // pred_region
      %s16 = ssub.s32 128, 128
      %17 = vsyncadd [#allocation4], %s16
      %s18 = sshll.u32 [#allocation3], 4
      %s19 = int_to_ptr.vmem [resolvable:$true] %s18
      %24 = dma.hbm_to_vmem [thread:$0]  %s0, 128, %s19, [#allocation4], 64, 64, 4
    $region5: #{tpu_custom_call.1} parent=1 // pred_fallthru
      _
    // Predicated region
    $region6: #{tpu_custom_call.1} parent=1 // pred_check
      _
    $region7: #{tpu_custom_call.1} parent=1 // pred_check_branch
      %26 = sbr.rel (0) target = $region9
    $region8: #{tpu_custom_call.1} parent=1 // pred_region
      %s28 = ssub.s32 256, 256
      %29 = vsyncadd [#allocation7], %s28
      %s30 = sshll.u32 [#allocation6], 4
      %s31 = int_to_ptr.vmem [resolvable:$true] %s30
      %36 = dma.hbm_to_vmem [thread:$0]  %s1, 256, %s31, [#allocation7], 64, 64, 4
    $region9: #{tpu_custom_call.1} parent=1 // pred_fallthru
      _
    // Predicated region
    $region10: #{tpu_custom_call.1} parent=1 // pred_check
      _
    $region11: #{tpu_custom_call.1} parent=1 // pred_check_branch
      %38 = sbr.rel (0) target = $region13
    $region12: #{tpu_custom_call.1} parent=1 // pred_region
      _
    $region13: #{tpu_custom_call.1} parent=1 // pred_fallthru
      _
    // Predicated region
    $region14: #{tpu_custom_call.1} parent=1 // pred_check
      _
    $region15: #{tpu_custom_call.1} parent=1 // pred_check_branch
      %40 = sbr.rel (0) target = $region17
    $region16: #{tpu_custom_call.1} parent=1 // pred_region
      %s42 = ssub.s32 256, 256
      %43 = vsyncadd [#allocation7], %s42
      %s44 = sshll.u32 [#allocation8], 4
      %s45 = int_to_ptr.vmem [resolvable:$true] %s44
      %50 = dma.hbm_to_vmem [thread:$0]  %s3, 256, %s45, [#allocation7], 64, 64, 4
    $region17: #{tpu_custom_call.1} parent=1 // pred_fallthru
      _
    // Predicated region
    $region18: #{tpu_custom_call.1} parent=1 // pred_check
      _
    $region19: #{tpu_custom_call.1} parent=1 // pred_check_branch
      %52 = sbr.rel (0) target = $region21
    $region20: #{tpu_custom_call.1} parent=1 // pred_region
      _
    $region21: #{tpu_custom_call.1} parent=1 // pred_fallthru
      _
    // Predicated region
    $region22: #{tpu_custom_call.1} parent=1 // pred_check
      _
    $region23: #{tpu_custom_call.1} parent=1 // pred_check_branch
      %54 = sbr.rel (0) target = $region25
    $region24: #{tpu_custom_call.1} parent=1 // pred_region
      %55 = dma.done [#allocation4], 128
    $region25: #{tpu_custom_call.1} parent=1 // pred_fallthru
      _
    // Predicated region
    $region26: #{tpu_custom_call.1} parent=1 // pred_check
      _
    $region27: #{tpu_custom_call.1} parent=1 // pred_check_branch
      %57 = sbr.rel (0) target = $region29
    $region28: #{tpu_custom_call.1} parent=1 // pred_region
      %58 = dma.done [#allocation7], 256
    $region29: #{tpu_custom_call.1} parent=1 // pred_fallthru
      _
    // Predicated region
    $region30: #{tpu_custom_call.1} parent=1 // pred_check
      _
    $region31: #{tpu_custom_call.1} parent=1 // pred_check_branch
      %60 = sbr.rel (0) target = $region33
    $region32: #{tpu_custom_call.1} parent=1 // pred_region
      %61 = dma.done [#allocation7], 256
    $region33: #{tpu_custom_call.1} parent=1 // pred_fallthru
      _
    %p63 = scmp.eq.s32.totalorder 0, 0
    // Predicated region
    $region34: #{tpu_custom_call.1} parent=1 // pred_check
      %p64 = pneg %p63
    $region35: #{tpu_custom_call.1} parent=1 // pred_check_branch
      %66 = sbr.rel (%p64) target = $region37
    $region36: #{tpu_custom_call.1} parent=1 // pred_region
      %vm67 = vcmask 261120
      %68 = vst.msk [vmem:[#allocation2] sm:$0xff] %vm67, 0.0
      %69 = vst.msk [vmem:[#allocation2 + $0x8] sm:$0xff] %vm67, 0.0
    $region37: #{tpu_custom_call.1} parent=1 // pred_fallthru
      _
    %v70 = vld [vmem:[#allocation2] sm:$0xff]
    %v71 = vld [vmem:[#allocation2 + $0x8] sm:$0xff]
    %v72 = vld [vmem:[#allocation3] sm:$0xf]
    %v73 = vld [vmem:[#allocation3 + $0x4] sm:$0xf]
    %v74 = vld [vmem:[#allocation6] sm:$0xf]
    %v75 = vld [vmem:[#allocation6 + $0x4] sm:$0xf]
    %v76 = vld [vmem:[#allocation6 + $0x8] sm:$0xf]
    %v77 = vld [vmem:[#allocation6 + $0xc] sm:$0xf]
    %v80 = vunpack.c.l.b16 %v72
    %v81 = vunpack.c.l.b16 %v73
    %v82 = vpack.c.b16 %v81, %v80
    %v87 = vunpack.c.l.b16 %v74
    %v88 = vunpack.c.l.b16 %v75
    %v89 = vunpack.c.l.b16 %v76
    %v90 = vunpack.c.l.b16 %v77
    %v91 = vpack.c.b16 %v88, %v87
    %v92 = vpack.c.b16 %v90, %v89
    %vm95 = vcmask 261120
    %v97 = vsel %vm95, %v82, 0
    %99 = vmatprep.subr.bf16.mxu0 0
    %100 = vmatpush1.bf16.msra.mxu0 %v91
    %101 = vmatprep.subr.bf16.mxu0 0
    %102 = vmatpush1.bf16.msra.mxu0 %v92
    %103 = vmatprep.subr.bf16.mxu0 0
    %104 = vmatpush1.bf16.msra.mxu0 0
    %105 = vmatprep.subr.bf16.mxu0 0
    %106 = vmatpush1.bf16.msra.mxu0 0
    %107 = vmatprep.subr.bf16.mxu0 0
    %108 = vmatpush1.bf16.msra.mxu0 0
    %109 = vmatprep.subr.bf16.mxu0 0
    %110 = vmatpush1.bf16.msra.mxu0 0
    %111 = vmatprep.subr.bf16.mxu0 0
    %112 = vmatpush1.bf16.msra.mxu0 0
    %113 = vmatprep.subr.bf16.mxu0 0
    %114 = vmatpush1.bf16.msra.mxu0 0
    %115 = vmatprep.subr.bf16.mxu0 0
    %116 = vmatpush1.bf16.msra.mxu0 0
    %117 = vmatprep.subr.bf16.mxu0 0
    %118 = vmatpush1.bf16.msra.mxu0 0
    %119 = vmatprep.subr.bf16.mxu0 0
    %120 = vmatpush1.bf16.msra.mxu0 0
    %121 = vmatprep.subr.bf16.mxu0 0
    %122 = vmatpush1.bf16.msra.mxu0 0
    %123 = vmatprep.subr.bf16.mxu0 0
    %124 = vmatpush1.bf16.msra.mxu0 0
    %125 = vmatprep.subr.bf16.mxu0 0
    %126 = vmatpush1.bf16.msra.mxu0 0
    %127 = vmatprep.subr.bf16.mxu0 0
    %128 = vmatpush1.bf16.msra.mxu0 0
    %129 = vmatprep.subr.bf16.mxu0 0
    %130 = vmatpush1.bf16.msra.mxu0 0
    %131 = vmatprep.mubr.bf16.mxu0 0
    %132 = vmatmul.mubr.bf16.gmra.mrb[0].mxu0 %v97
    %v133 = vpop.f32.mrb[0].mxu0
    %v134 = vadd.f32 0.0, %v133
    %v135 = vpop.f32.mrb[0].mxu0
    %v136 = vpop.f32.mrb[0].mxu0
    %v137 = vadd.f32 0.0, %v136
    %v138 = vpop.f32.mrb[0].mxu0
    %139 = vdwg.mxu0
    %v140 = vadd.f32 %v70, %v134
    %v141 = vadd.f32 %v71, %v137
    %142 = vst.msk [vmem:[#allocation2] sm:$0xff] %vm95, %v140
    %143 = vst.msk [vmem:[#allocation2 + $0x8] sm:$0xff] %vm95, %v141
    // Predicated region
    $region38: #{tpu_custom_call.1} parent=1 // pred_check
      %p144 = pneg %p63
    $region39: #{tpu_custom_call.1} parent=1 // pred_check_branch
      %146 = sbr.rel (%p144) target = $region41
    $region40: #{tpu_custom_call.1} parent=1 // pred_region
      %v147 = vld [vmem:[#allocation2] sm:$0xff]
      %v148 = vld [vmem:[#allocation2 + $0x8] sm:$0xff]
      %v149 = vld [vmem:[%s2] sm:$0x1]
      %v151 = vlaneseq
      %v152 = vshrl.u32 %v151, 7
      %v153 = vsub.s32 0, %v152
      %v154 = vrot.slane %v149, %v153
      %v156 = vadd.f32 %v147, %v154
      %v157 = vadd.f32 %v148, %v154
      %v158 = vtanh.pop %v156
      %v159 = vtanh.pop %v157
      %v160 = vpack.c.bf16 %v159, %v158
      %v161 = vld [vmem:[#allocation8] sm:$0xf]
      %v162 = vld [vmem:[#allocation8 + $0x4] sm:$0xf]
      %v163 = vld [vmem:[#allocation8 + $0x8] sm:$0xf]
      %v164 = vld [vmem:[#allocation8 + $0xc] sm:$0xf]
      %v165 = vld [vmem:[%s4] sm:$0x1]
      %v167 = vlaneseq
      %v168 = vshrl.u32 %v167, 7
      %v169 = vsub.s32 0, %v168
      %v170 = vrot.slane %v165, %v169
      %v176 = vunpack.c.l.b16 %v161
      %v177 = vunpack.c.l.b16 %v162
      %v178 = vunpack.c.l.b16 %v163
      %v179 = vunpack.c.l.b16 %v164
      %v180 = vpack.c.b16 %v177, %v176
      %v181 = vpack.c.b16 %v179, %v178
      %v185 = vsel %vm95, %v160, 0
      %187 = vmatprep.subr.bf16.mxu0 0
      %188 = vmatpush1.bf16.msra.mxu0 %v180
      %189 = vmatprep.subr.bf16.mxu0 0
      %190 = vmatpush1.bf16.msra.mxu0 %v181
      %191 = vmatprep.subr.bf16.mxu0 0
      %192 = vmatpush1.bf16.msra.mxu0 0
      %193 = vmatprep.subr.bf16.mxu0 0
      %194 = vmatpush1.bf16.msra.mxu0 0
      %195 = vmatprep.subr.bf16.mxu0 0
      %196 = vmatpush1.bf16.msra.mxu0 0
      %197 = vmatprep.subr.bf16.mxu0 0
      %198 = vmatpush1.bf16.msra.mxu0 0
      %199 = vmatprep.subr.bf16.mxu0 0
      %200 = vmatpush1.bf16.msra.mxu0 0
      %201 = vmatprep.subr.bf16.mxu0 0
      %202 = vmatpush1.bf16.msra.mxu0 0
      %203 = vmatprep.subr.bf16.mxu0 0
      %204 = vmatpush1.bf16.msra.mxu0 0
      %205 = vmatprep.subr.bf16.mxu0 0
      %206 = vmatpush1.bf16.msra.mxu0 0
      %207 = vmatprep.subr.bf16.mxu0 0
      %208 = vmatpush1.bf16.msra.mxu0 0
      %209 = vmatprep.subr.bf16.mxu0 0
      %210 = vmatpush1.bf16.msra.mxu0 0
      %211 = vmatprep.subr.bf16.mxu0 0
      %212 = vmatpush1.bf16.msra.mxu0 0
      %213 = vmatprep.subr.bf16.mxu0 0
      %214 = vmatpush1.bf16.msra.mxu0 0
      %215 = vmatprep.subr.bf16.mxu0 0
      %216 = vmatpush1.bf16.msra.mxu0 0
      %217 = vmatprep.subr.bf16.mxu0 0
      %218 = vmatpush1.bf16.msra.mxu0 0
      %219 = vmatprep.mubr.bf16.mxu0 0
      %220 = vmatmul.mubr.bf16.gmra.mrb[0].mxu0 %v185
      %v221 = vpop.f32.mrb[0].mxu0
      %v222 = vadd.f32 %v170, %v221
      %v223 = vpop.f32.mrb[0].mxu0
      %v224 = vpop.f32.mrb[0].mxu0
      %v225 = vadd.f32 %v170, %v224
      %v226 = vpop.f32.mrb[0].mxu0
      %227 = vdwg.mxu0
      %228 = vst [vmem:[#allocation9] sm:$0xff] %v222
      %229 = vst [vmem:[#allocation9 + $0x8] sm:$0xff] %v225
    $region41: #{tpu_custom_call.1} parent=1 // pred_fallthru
      _
    // Predicated region
    $region42: #{tpu_custom_call.1} parent=1 // pred_check
      _
    $region43: #{tpu_custom_call.1} parent=1 // pred_check_branch
      %231 = sbr.rel (0) target = $region45
    $region44: #{tpu_custom_call.1} parent=1 // pred_region
      %s233 = ssub.s32 256, 256
      %234 = vsyncadd [#allocation5], %s233
      %s235 = sshll.u32 [#allocation9], 4
      %s236 = int_to_ptr.vmem [resolvable:$true] %s235
      %241 = dma.vmem_to_hbm [thread:$0]  %s236, 256, %s5, [#allocation5], 128, 128, 8
    $region45: #{tpu_custom_call.1} parent=1 // pred_fallthru
      _
    // Predicated region
    $region46: #{tpu_custom_call.1} parent=1 // pred_check
      _
    $region47: #{tpu_custom_call.1} parent=1 // pred_check_branch
      %243 = sbr.rel (0) target = $region49
    $region48: #{tpu_custom_call.1} parent=1 // pred_region
      %244 = dma.done [#allocation5], 256
    $region49: #{tpu_custom_call.1} parent=1 // pred_fallthru
      _
    %245 = vsyncpa [#allocation4], 1
    %246 = vsyncpa [#allocation7], 1
    %247 = vsyncpa [#allocation5], 1

</llo_original>
